<compile_context>
chip_gen: v5e
topology: v5e:2x2
jax: 0.10.0
libtpu: 0.0.40
codegen_flags: <defaults>
</compile_context>

<pallas_src>
import functools
import math

import jax
import jax.numpy as jnp
from jax.experimental import pallas as pl
from jax.experimental.pallas import tpu as pltpu


def _round_up(a, m):
    return (a + m - 1) // m * m


def _lcm(a, b):
    return a * b // math.gcd(a, b)


# ----------------------------------------------------------------------------
# Parameter init (deterministic xavier_uniform, zero bias — matches
# initialize_weights_xavier in the reference module).
# ----------------------------------------------------------------------------
def init_decoder_params(key, hidden_channels, gain=1.0):
    params = []
    for k in range(1, len(hidden_channels)):
        fan_in, fan_out = hidden_channels[k - 1], hidden_channels[k]
        key, wkey = jax.random.split(key)
        bound = gain * math.sqrt(6.0 / (fan_in + fan_out))
        # stored (in, out); the xavier bound is symmetric in fan_in/fan_out so
        # the distribution matches PyTorch's (out, in) init exactly.
        w = jax.random.uniform(
            wkey, (fan_in, fan_out), dtype=jnp.float32, minval=-bound, maxval=bound
        )
        b = jnp.zeros((1, fan_out), dtype=jnp.float32)  # (1, out): 2D TPU layout
        params.append((w, b))
    return params


# ----------------------------------------------------------------------------
# Fused MLP kernel: every Linear (+ ReLU) happens inside the kernel on the MXU.
# Weights/biases are fully VMEM-resident; only x and out stream over the grid.
# The kernel is layout-agnostic: row packing is done entirely in the wrapper
# (packed inputs + block-diagonal weights), so there are no in-kernel reshapes.
# ----------------------------------------------------------------------------
def _mlp_kernel(num_layers, matmul_dtype, x_ref, *refs):
    out_ref = refs[-1]
    h = x_ref[...].astype(jnp.float32)
    for i in range(num_layers):
        w = refs[2 * i][...]
        b = refs[2 * i + 1][...]
        if matmul_dtype is not None:
            # bf16 feed for the MXU on v6e/v7x; accumulate in f32.
            acc = jnp.dot(
                h.astype(matmul_dtype),
                w.astype(matmul_dtype),
                preferred_element_type=jnp.float32,
            )
        else:
            acc = jnp.dot(h, w, preferred_element_type=jnp.float32)
        h = acc + b                       # bias-add / ReLU stay f32
        if i != num_layers - 1:           # activation between hidden layers only
            h = jnp.maximum(h, 0.0)       # nn.ReLU
    out_ref[...] = h.astype(out_ref.dtype)


def decoder_forward(
    x,
    params,
    *,
    tm=1024,
    matmul_dtype=None,
    max_packed_weight_bytes=4 * 1024 * 1024,
):
    """Apply the Decoder MLP to x of shape (..., hidden_channels[0])."""
    orig_shape = x.shape
    d_in = orig_shape[-1]
    x2d = x.reshape(-1, d_in).astype(jnp.float32)
    M = x2d.shape[0]
    dims = [d_in] + [w.shape[1] for w, _ in params]
    d_out = dims[-1]
    num_layers = len(params)

    # --- Row-packing factor p: make every packed width a multiple of 128 ----
    p = 1
    for d in dims:
        p = _lcm(p, 128 // math.gcd(128, d))
    packed_w_bytes = sum(p * p * w.size * 4 + p * b.size * 4 for w, b in params)
    if p > 16 or packed_w_bytes > max_packed_weight_bytes:
        p = 1  # fall back to the plain (unpacked) path — still correct

    if p > 1:
        # kron(I_p, W) is block-diagonal: packed_x @ kron(I_p, W) computes the
        # p independent row-matmuls side by side, fully lane-dense.
        kparams = [
            (jnp.kron(jnp.eye(p, dtype=w.dtype), w), jnp.tile(b, (1, p)))
            for w, b in params
        ]
    else:
        kparams = params

    weight_bytes = sum(w.size * 4 + b.size * 4 for w, b in kparams)
    row_mult = 8 * p  # packed row tile must stay a sublane (8) multiple

    # --- VMEM-driven cap on the row tile (input/output double-buffers + h) --
    act_bytes_per_row = 4 * (d_in + d_out + 2 * max(dims))
    budget = max(24 * 1024 * 1024 - weight_bytes, 4 * 1024 * 1024)
    cap_rows = max(row_mult, (budget // (2 * act_bytes_per_row)) // row_mult * row_mult)
    tm = min(tm, cap_rows)

    # --- Sanitize tile size & pad rows (never shrink tm to odd sizes) -------
    tm = max(row_mult, _round_up(min(tm, _round_up(M, row_mult)), row_mult))
    Mp = _round_up(M, tm)

    # v7x has 2 TensorCores: avoid a 1-step grid when there is real work.
    if Mp // tm == 1 and M > 512 and tm >= 2 * row_mult:
        tm = _round_up(tm // 2, row_mult)
        Mp = _round_up(M, tm)

    if Mp != M:
        x2d = jnp.pad(x2d, ((0, Mp - M), (0, 0)))

    # Wrapper-side packing reshape (contiguous, free in XLA).
    xk = x2d.reshape(Mp // p, p * d_in) if p > 1 else x2d

    grid = (Mp // tm,)
    btm = tm // p  # rows per block in packed space (multiple of 8)

    # --- Specs ---------------------------------------------------------------
    in_specs = [pl.BlockSpec((btm, p * d_in), lambda i: (i, 0))]
    flat_params = []
    for w, b in kparams:
        flat_params += [w, b]
        in_specs += [
            pl.BlockSpec(w.shape, lambda i: (0, 0)),  # full weight, resident
            pl.BlockSpec(b.shape, lambda i: (0, 0)),
        ]
    out_specs = pl.BlockSpec((btm, p * d_out), lambda i: (i, 0))

    # --- Cost estimate (lets XLA schedule around the custom call) -----------
    flops = 2 * (Mp // p) * sum(w.shape[0] * w.shape[1] for w, _ in kparams)
    bytes_accessed = Mp * d_in * 4 + Mp * d_out * 4 + weight_bytes
    cost = pl.CostEstimate(
        flops=flops, transcendentals=0, bytes_accessed=bytes_accessed
    )

    out = pl.pallas_call(
        functools.partial(_mlp_kernel, num_layers, matmul_dtype),
        out_shape=jax.ShapeDtypeStruct((Mp // p, p * d_out), jnp.float32),
        grid_spec=pltpu.PrefetchScalarGridSpec(
            num_scalar_prefetch=0,
            grid=grid,
            in_specs=in_specs,
            out_specs=out_specs,
        ),
        compiler_params=pltpu.CompilerParams(
            dimension_semantics=("parallel",),
            # Safe on all generations (v7x physical VMEM is only 64 MiB).
            vmem_limit_bytes=32 * 1024 * 1024,
        ),
        cost_estimate=cost,
    )(xk, *flat_params)

    out = out.reshape(Mp, d_out)[:M]
    return out.reshape(*orig_shape[:-1], d_out)


# ----------------------------------------------------------------------------
# Pure-JAX reference (mirrors the PyTorch forward) for a correctness check.
# ----------------------------------------------------------------------------
def decoder_ref(x, params):
    h = x
    for i, (w, b) in enumerate(params):
        h = h @ w + b[0]
        if i != len(params) - 1:
            h = jnp.maximum(h, 0.0)
    return h


if __name__ == "__main__":
    # Decoder(hidden_channels=[32, 64, 64, 16], activation=nn.ReLU())
    hidden_channels = [32, 64, 64, 16]

    key = jax.random.PRNGKey(0)
    pkey, xkey = jax.random.split(key)
    params = init_decoder_params(pkey, hidden_channels)

    # x: (batch=2, seq=8, hidden=32) — Linear applies to the trailing dim.
    x = jax.random.normal(xkey, (2, 8, hidden_channels[0]), dtype=jnp.float32)

    y = decoder_forward(x, params)  # default f32 matmuls (exact vs reference)
    y = jax.block_until_ready(y)

    y_ref = decoder_ref(x, params)
    assert y.shape == (2, 8, hidden_channels[-1]), y.shape
    assert jnp.allclose(y, y_ref, atol=1e-5, rtol=1e-5), (
        float(jnp.max(jnp.abs(y - y_ref)))
    )

    print("KERNEL_OK")
</pallas_src>

<mosaic_0001>
module attributes {stable_mosaic.version = 11 : i64} {
  func.func @_mlp_kernel(%arg0: i32, %arg1: memref<8x256xf32, #tpu.memory_space<vmem>>, %arg2: memref<256x512xf32, #tpu.memory_space<vmem>>, %arg3: memref<1x512xf32, #tpu.memory_space<vmem>>, %arg4: memref<512x512xf32, #tpu.memory_space<vmem>>, %arg5: memref<1x512xf32, #tpu.memory_space<vmem>>, %arg6: memref<512x128xf32, #tpu.memory_space<vmem>>, %arg7: memref<1x128xf32, #tpu.memory_space<vmem>>, %arg8: memref<8x128xf32, #tpu.memory_space<vmem>>) attributes {dimension_semantics = [#tpu.dimension_semantics<parallel>], iteration_bounds = array<i64: 1>, scalar_prefetch = 0 : i64, scratch_operands = 0 : i64, tpu.core_type = #tpu.core_type<tc>, window_params = [{transform_indices = @transform_0, window_bounds = array<i64: 8, 256>}, {pipeline_mode = #tpu.pipeline_mode<synchronous>, transform_indices = @transform_1, window_bounds = array<i64: 256, 512>}, {pipeline_mode = #tpu.pipeline_mode<synchronous>, transform_indices = @transform_2, window_bounds = array<i64: 1, 512>}, {pipeline_mode = #tpu.pipeline_mode<synchronous>, transform_indices = @transform_3, window_bounds = array<i64: 512, 512>}, {pipeline_mode = #tpu.pipeline_mode<synchronous>, transform_indices = @transform_4, window_bounds = array<i64: 1, 512>}, {pipeline_mode = #tpu.pipeline_mode<synchronous>, transform_indices = @transform_5, window_bounds = array<i64: 512, 128>}, {pipeline_mode = #tpu.pipeline_mode<synchronous>, transform_indices = @transform_6, window_bounds = array<i64: 1, 128>}, {transform_indices = @transform_7, window_bounds = array<i64: 8, 128>}]} {
    %c0 = arith.constant 0 : index
    %c0_0 = arith.constant 0 : index
    %0 = vector.load %arg1[%c0, %c0_0] : memref<8x256xf32, #tpu.memory_space<vmem>>, vector<8x256xf32>
    %c0_1 = arith.constant 0 : index
    %c0_2 = arith.constant 0 : index
    %1 = vector.load %arg2[%c0_1, %c0_2] : memref<256x512xf32, #tpu.memory_space<vmem>>, vector<256x512xf32>
    %c0_3 = arith.constant 0 : index
    %c0_4 = arith.constant 0 : index
    %2 = vector.load %arg3[%c0_3, %c0_4] : memref<1x512xf32, #tpu.memory_space<vmem>>, vector<1x512xf32>
    %cst = arith.constant dense<0.000000e+00> : vector<8x512xf32>
    %3 = tpu.matmul %0, %1, %cst {dimension_numbers = #tpu.dot_dimension_numbers<[1], [0], [0], [1], [0, 0, 1, 1], [], []>} : vector<8x256xf32>, vector<256x512xf32>, vector<8x512xf32> -> vector<8x512xf32>
    %4 = vector.broadcast %2 : vector<1x512xf32> to vector<8x512xf32>
    %5 = arith.addf %3, %4 : vector<8x512xf32>
    %cst_5 = arith.constant 0.000000e+00 : f32
    %6 = vector.broadcast %cst_5 : f32 to vector<8x512xf32>
    %7 = arith.maximumf %5, %6 : vector<8x512xf32>
    %c0_6 = arith.constant 0 : index
    %c0_7 = arith.constant 0 : index
    %8 = vector.load %arg4[%c0_6, %c0_7] : memref<512x512xf32, #tpu.memory_space<vmem>>, vector<512x512xf32>
    %c0_8 = arith.constant 0 : index
    %c0_9 = arith.constant 0 : index
    %9 = vector.load %arg5[%c0_8, %c0_9] : memref<1x512xf32, #tpu.memory_space<vmem>>, vector<1x512xf32>
    %cst_10 = arith.constant dense<0.000000e+00> : vector<8x512xf32>
    %10 = tpu.matmul %7, %8, %cst_10 {dimension_numbers = #tpu.dot_dimension_numbers<[1], [0], [0], [1], [0, 0, 1, 1], [], []>} : vector<8x512xf32>, vector<512x512xf32>, vector<8x512xf32> -> vector<8x512xf32>
    %11 = vector.broadcast %9 : vector<1x512xf32> to vector<8x512xf32>
    %12 = arith.addf %10, %11 : vector<8x512xf32>
    %cst_11 = arith.constant 0.000000e+00 : f32
    %13 = vector.broadcast %cst_11 : f32 to vector<8x512xf32>
    %14 = arith.maximumf %12, %13 : vector<8x512xf32>
    %c0_12 = arith.constant 0 : index
    %c0_13 = arith.constant 0 : index
    %15 = vector.load %arg6[%c0_12, %c0_13] : memref<512x128xf32, #tpu.memory_space<vmem>>, vector<512x128xf32>
    %c0_14 = arith.constant 0 : index
    %c0_15 = arith.constant 0 : index
    %16 = vector.load %arg7[%c0_14, %c0_15] : memref<1x128xf32, #tpu.memory_space<vmem>>, vector<1x128xf32>
    %cst_16 = arith.constant dense<0.000000e+00> : vector<8x128xf32>
    %17 = tpu.matmul %14, %15, %cst_16 {dimension_numbers = #tpu.dot_dimension_numbers<[1], [0], [0], [1], [0, 0, 1, 1], [], []>} : vector<8x512xf32>, vector<512x128xf32>, vector<8x128xf32> -> vector<8x128xf32>
    %18 = vector.broadcast %16 : vector<1x128xf32> to vector<8x128xf32>
    %19 = arith.addf %17, %18 : vector<8x128xf32>
    %c0_17 = arith.constant 0 : index
    %c0_18 = arith.constant 0 : index
    %20 = vector.load %arg8[%c0_17, %c0_18] : memref<8x128xf32, #tpu.memory_space<vmem>>, vector<8x128xf32>
    tpu.vector_store %arg8[%c0_17, %c0_18], %19 {strides = array<i32>} : memref<8x128xf32, #tpu.memory_space<vmem>>, vector<8x128xf32>,
    return
  }
  func.func @transform_0(%arg0: i32) -> (i32, i32) {
    %c0_i32 = arith.constant 0 : i32
    %c0_i32_0 = arith.constant 0 : i32
    return %arg0, %c0_i32 : i32, i32
  }
  func.func @transform_1(%arg0: i32) -> (i32, i32) {
    %c0_i32 = arith.constant 0 : i32
    %c0_i32_0 = arith.constant 0 : i32
    %c0_i32_1 = arith.constant 0 : i32
    return %c0_i32, %c0_i32_0 : i32, i32
  }
  func.func @transform_2(%arg0: i32) -> (i32, i32) {
    %c0_i32 = arith.constant 0 : i32
    %c0_i32_0 = arith.constant 0 : i32
    %c0_i32_1 = arith.constant 0 : i32
    return %c0_i32, %c0_i32_0 : i32, i32
  }
  func.func @transform_3(%arg0: i32) -> (i32, i32) {
    %c0_i32 = arith.constant 0 : i32
    %c0_i32_0 = arith.constant 0 : i32
    %c0_i32_1 = arith.constant 0 : i32
    return %c0_i32, %c0_i32_0 : i32, i32
  }
  func.func @transform_4(%arg0: i32) -> (i32, i32) {
    %c0_i32 = arith.constant 0 : i32
    %c0_i32_0 = arith.constant 0 : i32
    %c0_i32_1 = arith.constant 0 : i32
    return %c0_i32, %c0_i32_0 : i32, i32
  }
  func.func @transform_5(%arg0: i32) -> (i32, i32) {
    %c0_i32 = arith.constant 0 : i32
    %c0_i32_0 = arith.constant 0 : i32
    %c0_i32_1 = arith.constant 0 : i32
    return %c0_i32, %c0_i32_0 : i32, i32
  }
  func.func @transform_6(%arg0: i32) -> (i32, i32) {
    %c0_i32 = arith.constant 0 : i32
    %c0_i32_0 = arith.constant 0 : i32
    %c0_i32_1 = arith.constant 0 : i32
    return %c0_i32, %c0_i32_0 : i32, i32
  }
  func.func @transform_7(%arg0: i32) -> (i32, i32) {
    %c0_i32 = arith.constant 0 : i32
    %c0_i32_0 = arith.constant 0 : i32
    return %arg0, %c0_i32 : i32, i32
  }
}

</mosaic_0001>

<llo_original>
// kernel: tpu_custom_call.1
$region0: #{tpu_custom_call.1}
  #allocation0 [shape = 'u32[]', space=smem, size = 0x4, offset = 0x4, fixed_abs, tag = 'smem constant byte address 0x4 - core index']
  #allocation1 [shape = 'u32[72,128]{1,0:T(1,128)}', space=vmem, size = 0x9000, scoped, tag = 'internal scratch']
  %s0 = inlined_call_operand.hbm [shape: f32[8,256], index: 0, kind: input, shape index: {}]
  %s1 = inlined_call_operand.hbm [shape: f32[256,512], index: 1, kind: input, shape index: {}]
  %s2 = inlined_call_operand.hbm [shape: f32[1,512], index: 2, kind: input, shape index: {}]
  %s3 = inlined_call_operand.hbm [shape: f32[512,512], index: 3, kind: input, shape index: {}]
  %s4 = inlined_call_operand.hbm [shape: f32[1,512], index: 4, kind: input, shape index: {}]
  %s5 = inlined_call_operand.hbm [shape: f32[512,128], index: 5, kind: input, shape index: {}]
  %s6 = inlined_call_operand.vmem [shape: f32[1,128], index: 6, kind: input, shape index: {}]
  %s7 = inlined_call_operand.hbm [shape: f32[8,128], index: 7, kind: output, shape index: {}]
  %s8 = sld [smem:[#allocation0]]
  $region62: #{tpu_custom_call.1} parent=0
    _
  %s10 = ssub.s32 1, %s8
  %s11 = scalar_select 0, %s10, %s8
  $region1: #{tpu_custom_call.1} parent=0
    #allocation2 [shape = 'u8[8192]{0}', space=vmem, size = 0x2000, scoped, tag = 'input window, operand 0, single buffered']
    #allocation3 [shape = 's32[1]{0}', space=sflag, size = 0x4, scoped, tag = 'scoped memory for tpu_custom_call.1']
    #allocation4 [shape = 's32[1]{0}', space=sflag, size = 0x4, scoped, tag = 'scoped memory for tpu_custom_call.1']
    #allocation5 [shape = 'u8[524288]{0}', space=vmem, size = 0x80000, scoped, tag = 'input window, operand 1, single buffered']
    #allocation6 [shape = 's32[1]{0}', space=sflag, size = 0x4, scoped, tag = 'scoped memory for tpu_custom_call.1']
    #allocation7 [shape = 'u8[2048]{0}', space=vmem, size = 0x800, scoped, tag = 'input window, operand 2, single buffered']
    #allocation8 [shape = 'u8[1048576]{0}', space=vmem, size = 0x100000, scoped, tag = 'input window, operand 3, single buffered']
    #allocation9 [shape = 's32[1]{0}', space=sflag, size = 0x4, scoped, tag = 'scoped memory for tpu_custom_call.1']
    #allocation10 [shape = 'u8[2048]{0}', space=vmem, size = 0x800, scoped, tag = 'input window, operand 4, single buffered']
    #allocation11 [shape = 'u8[262144]{0}', space=vmem, size = 0x40000, scoped, tag = 'input window, operand 5, single buffered']
    #allocation12 [shape = 's32[1]{0}', space=sflag, size = 0x4, scoped, tag = 'scoped memory for tpu_custom_call.1']
    #allocation13 [shape = 'u8[4096]{0}', space=vmem, size = 0x1000, scoped, tag = 'output window, operand 0, single buffered']
    %12 = vsyncpa [#allocation3], 0
    %13 = vsyncpa [#allocation6], 0
    %14 = vsyncpa [#allocation9], 0
    %15 = vsyncpa [#allocation12], 0
    %16 = vsyncpa [#allocation4], 0
    // Predicated region
    $region2: #{tpu_custom_call.1} parent=1 // pred_check
      _
    $region3: #{tpu_custom_call.1} parent=1 // pred_check_branch
      %18 = sbr.rel (0) target = $region5
    $region4: #{tpu_custom_call.1} parent=1 // pred_region
      %20 = vsyncadd [#allocation3], 0
      %s22 = sshll.u32 %s0, 4
      %s23 = int_to_ptr.hbm [resolvable:$true] %s22
      %s24 = sshll.u32 [#allocation2], 4
      %s25 = int_to_ptr.vmem [resolvable:$true] %s24
      %27 = dma.hbm_to_vmem [thread:$0]  %s23, 256, %s25, [#allocation3]
    $region5: #{tpu_custom_call.1} parent=1 // pred_fallthru
      _
    // Predicated region
    $region6: #{tpu_custom_call.1} parent=1 // pred_check
      _
    $region7: #{tpu_custom_call.1} parent=1 // pred_check_branch
      %29 = sbr.rel (0) target = $region9
    $region8: #{tpu_custom_call.1} parent=1 // pred_region
      %31 = vsyncadd [#allocation6], 0
      %s32 = sshll.u32 %s1, 4
      %s33 = int_to_ptr.hbm [resolvable:$true] %s32
      %s34 = sshll.u32 [#allocation5], 4
      %s35 = int_to_ptr.vmem [resolvable:$true] %s34
      %40 = dma.hbm_to_vmem [thread:$0]  %s33, 16384, %s35, [#allocation6], 512, 512, 32
    $region9: #{tpu_custom_call.1} parent=1 // pred_fallthru
      _
    // Predicated region
    $region10: #{tpu_custom_call.1} parent=1 // pred_check
      _
    $region11: #{tpu_custom_call.1} parent=1 // pred_check_branch
      %42 = sbr.rel (0) target = $region13
    $region12: #{tpu_custom_call.1} parent=1 // pred_region
      %44 = vsyncadd [#allocation6], 0
      %s46 = sshll.u32 %s2, 4
      %s47 = int_to_ptr.hbm [resolvable:$true] %s46
      %s48 = sshll.u32 [#allocation7], 4
      %s49 = int_to_ptr.vmem [resolvable:$true] %s48
      %51 = dma.hbm_to_vmem [thread:$0]  %s47, 64, %s49, [#allocation6]
    $region13: #{tpu_custom_call.1} parent=1 // pred_fallthru
      _
    // Predicated region
    $region14: #{tpu_custom_call.1} parent=1 // pred_check
      _
    $region15: #{tpu_custom_call.1} parent=1 // pred_check_branch
      %53 = sbr.rel (0) target = $region17
    $region16: #{tpu_custom_call.1} parent=1 // pred_region
      %55 = vsyncadd [#allocation9], 0
      %s56 = sshll.u32 %s3, 4
      %s57 = int_to_ptr.hbm [resolvable:$true] %s56
      %s58 = sshll.u32 [#allocation8], 4
      %s59 = int_to_ptr.vmem [resolvable:$true] %s58
      %64 = dma.hbm_to_vmem [thread:$0]  %s57, 32768, %s59, [#allocation9], 512, 512, 32
    $region17: #{tpu_custom_call.1} parent=1 // pred_fallthru
      _
    // Predicated region
    $region18: #{tpu_custom_call.1} parent=1 // pred_check
      _
    $region19: #{tpu_custom_call.1} parent=1 // pred_check_branch
      %66 = sbr.rel (0) target = $region21
    $region20: #{tpu_custom_call.1} parent=1 // pred_region
      %68 = vsyncadd [#allocation9], 0
      %s70 = sshll.u32 %s4, 4
      %s71 = int_to_ptr.hbm [resolvable:$true] %s70
      %s72 = sshll.u32 [#allocation10], 4
      %s73 = int_to_ptr.vmem [resolvable:$true] %s72
      %75 = dma.hbm_to_vmem [thread:$0]  %s71, 64, %s73, [#allocation9]
    $region21: #{tpu_custom_call.1} parent=1 // pred_fallthru
      _
    // Predicated region
    $region22: #{tpu_custom_call.1} parent=1 // pred_check
      _
    $region23: #{tpu_custom_call.1} parent=1 // pred_check_branch
      %77 = sbr.rel (0) target = $region25
    $region24: #{tpu_custom_call.1} parent=1 // pred_region
      %79 = vsyncadd [#allocation12], 0
      %s80 = sshll.u32 %s5, 4
      %s81 = int_to_ptr.hbm [resolvable:$true] %s80
      %s82 = sshll.u32 [#allocation11], 4
      %s83 = int_to_ptr.vmem [resolvable:$true] %s82
      %88 = dma.hbm_to_vmem [thread:$0]  %s81, 8192, %s83, [#allocation12], 128, 128, 8
    $region25: #{tpu_custom_call.1} parent=1 // pred_fallthru
      _
    // Predicated region
    $region26: #{tpu_custom_call.1} parent=1 // pred_check
      _
    $region27: #{tpu_custom_call.1} parent=1 // pred_check_branch
      %90 = sbr.rel (0) target = $region29
    $region28: #{tpu_custom_call.1} parent=1 // pred_region
      _
    $region29: #{tpu_custom_call.1} parent=1 // pred_fallthru
      _
    // Predicated region
    $region30: #{tpu_custom_call.1} parent=1 // pred_check
      _
    $region31: #{tpu_custom_call.1} parent=1 // pred_check_branch
      %92 = sbr.rel (0) target = $region33
    $region32: #{tpu_custom_call.1} parent=1 // pred_region
      %94 = dma.done [#allocation3], 256
    $region33: #{tpu_custom_call.1} parent=1 // pred_fallthru
      _
    // Predicated region
    $region34: #{tpu_custom_call.1} parent=1 // pred_check
      _
    $region35: #{tpu_custom_call.1} parent=1 // pred_check_branch
      %96 = sbr.rel (0) target = $region37
    $region36: #{tpu_custom_call.1} parent=1 // pred_region
      %98 = dma.done [#allocation6], 16384
    $region37: #{tpu_custom_call.1} parent=1 // pred_fallthru
      _
    // Predicated region
    $region38: #{tpu_custom_call.1} parent=1 // pred_check
      _
    $region39: #{tpu_custom_call.1} parent=1 // pred_check_branch
      %100 = sbr.rel (0) target = $region41
    $region40: #{tpu_custom_call.1} parent=1 // pred_region
      %102 = dma.done [#allocation6], 64
    $region41: #{tpu_custom_call.1} parent=1 // pred_fallthru
      _
    // Predicated region
    $region42: #{tpu_custom_call.1} parent=1 // pred_check
      _
    $region43: #{tpu_custom_call.1} parent=1 // pred_check_branch
      %104 = sbr.rel (0) target = $region45
    $region44: #{tpu_custom_call.1} parent=1 // pred_region
      %106 = dma.done [#allocation9], 32768
    $region45: #{tpu_custom_call.1} parent=1 // pred_fallthru
      _
    // Predicated region
    $region46: #{tpu_custom_call.1} parent=1 // pred_check
      _
    $region47: #{tpu_custom_call.1} parent=1 // pred_check_branch
      %108 = sbr.rel (0) target = $region49
    $region48: #{tpu_custom_call.1} parent=1 // pred_region
      %110 = dma.done [#allocation9], 64
    $region49: #{tpu_custom_call.1} parent=1 // pred_fallthru
      _
    // Predicated region
    $region50: #{tpu_custom_call.1} parent=1 // pred_check
      _
    $region51: #{tpu_custom_call.1} parent=1 // pred_check_branch
      %112 = sbr.rel (0) target = $region53
    $region52: #{tpu_custom_call.1} parent=1 // pred_region
      %114 = dma.done [#allocation12], 8192
    $region53: #{tpu_custom_call.1} parent=1 // pred_fallthru
      _
    %v115 = vld [vmem:[#allocation2] sm:$0xff]
    %v116 = vld [vmem:[#allocation2 + $0x8] sm:$0xff]
    %v117 = vld [vmem:[#allocation5] sm:$0xff]
    %v118 = vld [vmem:[#allocation5 + $0x8] sm:$0xff]
    %v119 = vld [vmem:[#allocation5 + $0x10] sm:$0xff]
    %v120 = vld [vmem:[#allocation5 + $0x18] sm:$0xff]
    %v121 = vld [vmem:[#allocation5 + $0x20] sm:$0xff]
    %v122 = vld [vmem:[#allocation5 + $0x28] sm:$0xff]
    %v123 = vld [vmem:[#allocation5 + $0x30] sm:$0xff]
    %v124 = vld [vmem:[#allocation5 + $0x38] sm:$0xff]
    %v125 = vld [vmem:[#allocation5 + $0x40] sm:$0xff]
    %v126 = vld [vmem:[#allocation5 + $0x48] sm:$0xff]
    %v127 = vld [vmem:[#allocation5 + $0x50] sm:$0xff]
    %v128 = vld [vmem:[#allocation5 + $0x58] sm:$0xff]
    %v129 = vld [vmem:[#allocation5 + $0x60] sm:$0xff]
    %v130 = vld [vmem:[#allocation5 + $0x68] sm:$0xff]
    %v131 = vld [vmem:[#allocation5 + $0x70] sm:$0xff]
    %v132 = vld [vmem:[#allocation5 + $0x78] sm:$0xff]
    %v133 = vld [vmem:[#allocation5 + $0x80] sm:$0xff]
    %v134 = vld [vmem:[#allocation5 + $0x88] sm:$0xff]
    %v135 = vld [vmem:[#allocation5 + $0x90] sm:$0xff]
    %v136 = vld [vmem:[#allocation5 + $0x98] sm:$0xff]
    %v137 = vld [vmem:[#allocation5 + $0xa0] sm:$0xff]
    %v138 = vld [vmem:[#allocation5 + $0xa8] sm:$0xff]
    %v139 = vld [vmem:[#allocation5 + $0xb0] sm:$0xff]
    %v140 = vld [vmem:[#allocation5 + $0xb8] sm:$0xff]
    %v141 = vld [vmem:[#allocation5 + $0xc0] sm:$0xff]
    %v142 = vld [vmem:[#allocation5 + $0xc8] sm:$0xff]
    %v143 = vld [vmem:[#allocation5 + $0xd0] sm:$0xff]
    %v144 = vld [vmem:[#allocation5 + $0xd8] sm:$0xff]
    %v145 = vld [vmem:[#allocation5 + $0xe0] sm:$0xff]
    %v146 = vld [vmem:[#allocation5 + $0xe8] sm:$0xff]
    %v147 = vld [vmem:[#allocation5 + $0xf0] sm:$0xff]
    %v148 = vld [vmem:[#allocation5 + $0xf8] sm:$0xff]
    %v149 = vld [vmem:[#allocation5 + $0x100] sm:$0xff]
    %v150 = vld [vmem:[#allocation5 + $0x108] sm:$0xff]
    %v151 = vld [vmem:[#allocation5 + $0x110] sm:$0xff]
    %v152 = vld [vmem:[#allocation5 + $0x118] sm:$0xff]
    %v153 = vld [vmem:[#allocation5 + $0x120] sm:$0xff]
    %v154 = vld [vmem:[#allocation5 + $0x128] sm:$0xff]
    %v155 = vld [vmem:[#allocation5 + $0x130] sm:$0xff]
    %v156 = vld [vmem:[#allocation5 + $0x138] sm:$0xff]
    %v157 = vld [vmem:[#allocation5 + $0x140] sm:$0xff]
    %v158 = vld [vmem:[#allocation5 + $0x148] sm:$0xff]
    %v159 = vld [vmem:[#allocation5 + $0x150] sm:$0xff]
    %v160 = vld [vmem:[#allocation5 + $0x158] sm:$0xff]
    %v161 = vld [vmem:[#allocation5 + $0x160] sm:$0xff]
    %v162 = vld [vmem:[#allocation5 + $0x168] sm:$0xff]
    %v163 = vld [vmem:[#allocation5 + $0x170] sm:$0xff]
    %v164 = vld [vmem:[#allocation5 + $0x178] sm:$0xff]
    %v165 = vld [vmem:[#allocation5 + $0x180] sm:$0xff]
    %v166 = vld [vmem:[#allocation5 + $0x188] sm:$0xff]
    %v167 = vld [vmem:[#allocation5 + $0x190] sm:$0xff]
    %v168 = vld [vmem:[#allocation5 + $0x198] sm:$0xff]
    %v169 = vld [vmem:[#allocation5 + $0x1a0] sm:$0xff]
    %v170 = vld [vmem:[#allocation5 + $0x1a8] sm:$0xff]
    %v171 = vld [vmem:[#allocation5 + $0x1b0] sm:$0xff]
    %v172 = vld [vmem:[#allocation5 + $0x1b8] sm:$0xff]
    %v173 = vld [vmem:[#allocation5 + $0x1c0] sm:$0xff]
    %v174 = vld [vmem:[#allocation5 + $0x1c8] sm:$0xff]
    %v175 = vld [vmem:[#allocation5 + $0x1d0] sm:$0xff]
    %v176 = vld [vmem:[#allocation5 + $0x1d8] sm:$0xff]
    %v177 = vld [vmem:[#allocation5 + $0x1e0] sm:$0xff]
    %v178 = vld [vmem:[#allocation5 + $0x1e8] sm:$0xff]
    %v179 = vld [vmem:[#allocation5 + $0x1f0] sm:$0xff]
    %v180 = vld [vmem:[#allocation5 + $0x1f8] sm:$0xff]
    %v181 = vld [vmem:[#allocation5 + $0x200] sm:$0xff]
    %v182 = vld [vmem:[#allocation5 + $0x208] sm:$0xff]
    %v183 = vld [vmem:[#allocation5 + $0x210] sm:$0xff]
    %v184 = vld [vmem:[#allocation5 + $0x218] sm:$0xff]
    %v185 = vld [vmem:[#allocation5 + $0x220] sm:$0xff]
    %v186 = vld [vmem:[#allocation5 + $0x228] sm:$0xff]
    %v187 = vld [vmem:[#allocation5 + $0x230] sm:$0xff]
    %v188 = vld [vmem:[#allocation5 + $0x238] sm:$0xff]
    %v189 = vld [vmem:[#allocation5 + $0x240] sm:$0xff]
    %v190 = vld [vmem:[#allocation5 + $0x248] sm:$0xff]
    %v191 = vld [vmem:[#allocation5 + $0x250] sm:$0xff]
    %v192 = vld [vmem:[#allocation5 + $0x258] sm:$0xff]
    %v193 = vld [vmem:[#allocation5 + $0x260] sm:$0xff]
    %v194 = vld [vmem:[#allocation5 + $0x268] sm:$0xff]
    %v195 = vld [vmem:[#allocation5 + $0x270] sm:$0xff]
    %v196 = vld [vmem:[#allocation5 + $0x278] sm:$0xff]
    %v197 = vld [vmem:[#allocation5 + $0x280] sm:$0xff]
    %v198 = vld [vmem:[#allocation5 + $0x288] sm:$0xff]
    %v199 = vld [vmem:[#allocation5 + $0x290] sm:$0xff]
    %v200 = vld [vmem:[#allocation5 + $0x298] sm:$0xff]
    %v201 = vld [vmem:[#allocation5 + $0x2a0] sm:$0xff]
    %v202 = vld [vmem:[#allocation5 + $0x2a8] sm:$0xff]
    %v203 = vld [vmem:[#allocation5 + $0x2b0] sm:$0xff]
    %v204 = vld [vmem:[#allocation5 + $0x2b8] sm:$0xff]
    %v205 = vld [vmem:[#allocation5 + $0x2c0] sm:$0xff]
    %v206 = vld [vmem:[#allocation5 + $0x2c8] sm:$0xff]
    %v207 = vld [vmem:[#allocation5 + $0x2d0] sm:$0xff]
    %v208 = vld [vmem:[#allocation5 + $0x2d8] sm:$0xff]
    %v209 = vld [vmem:[#allocation5 + $0x2e0] sm:$0xff]
    %v210 = vld [vmem:[#allocation5 + $0x2e8] sm:$0xff]
    %v211 = vld [vmem:[#allocation5 + $0x2f0] sm:$0xff]
    %v212 = vld [vmem:[#allocation5 + $0x2f8] sm:$0xff]
    %v213 = vld [vmem:[#allocation5 + $0x300] sm:$0xff]
    %v214 = vld [vmem:[#allocation5 + $0x308] sm:$0xff]
    %v215 = vld [vmem:[#allocation5 + $0x310] sm:$0xff]
    %v216 = vld [vmem:[#allocation5 + $0x318] sm:$0xff]
    %v217 = vld [vmem:[#allocation5 + $0x320] sm:$0xff]
    %v218 = vld [vmem:[#allocation5 + $0x328] sm:$0xff]
    %v219 = vld [vmem:[#allocation5 + $0x330] sm:$0xff]
    %v220 = vld [vmem:[#allocation5 + $0x338] sm:$0xff]
    %v221 = vld [vmem:[#allocation5 + $0x340] sm:$0xff]
    %v222 = vld [vmem:[#allocation5 + $0x348] sm:$0xff]
    %v223 = vld [vmem:[#allocation5 + $0x350] sm:$0xff]
    %v224 = vld [vmem:[#allocation5 + $0x358] sm:$0xff]
    %v225 = vld [vmem:[#allocation5 + $0x360] sm:$0xff]
    %v226 = vld [vmem:[#allocation5 + $0x368] sm:$0xff]
    %v227 = vld [vmem:[#allocation5 + $0x370] sm:$0xff]
    %v228 = vld [vmem:[#allocation5 + $0x378] sm:$0xff]
    %v229 = vld [vmem:[#allocation5 + $0x380] sm:$0xff]
    %v230 = vld [vmem:[#allocation5 + $0x388] sm:$0xff]
    %v231 = vld [vmem:[#allocation5 + $0x390] sm:$0xff]
    %v232 = vld [vmem:[#allocation5 + $0x398] sm:$0xff]
    %v233 = vld [vmem:[#allocation5 + $0x3a0] sm:$0xff]
    %v234 = vld [vmem:[#allocation5 + $0x3a8] sm:$0xff]
    %v235 = vld [vmem:[#allocation5 + $0x3b0] sm:$0xff]
    %v236 = vld [vmem:[#allocation5 + $0x3b8] sm:$0xff]
    %v237 = vld [vmem:[#allocation5 + $0x3c0] sm:$0xff]
    %v238 = vld [vmem:[#allocation5 + $0x3c8] sm:$0xff]
    %v239 = vld [vmem:[#allocation5 + $0x3d0] sm:$0xff]
    %v240 = vld [vmem:[#allocation5 + $0x3d8] sm:$0xff]
    %v241 = vld [vmem:[#allocation5 + $0x3e0] sm:$0xff]
    %v242 = vld [vmem:[#allocation5 + $0x3e8] sm:$0xff]
    %v243 = vld [vmem:[#allocation5 + $0x3f0] sm:$0xff]
    %v244 = vld [vmem:[#allocation5 + $0x3f8] sm:$0xff]
    %v245 = vld [vmem:[#allocation7] sm:$0xf]
    %v247 = vperm.slane %v245, 0
    %v248 = vperm.slane %v245, 1
    %v249 = vperm.slane %v245, 2
    %v250 = vperm.slane %v245, 3
    %255 = vmatpush.msra.mxu0 %v177
    %256 = vmatpush.msra.mxu0 %v173
    %257 = vmatpush.msra.mxu0 %v169
    %258 = vmatpush.msra.mxu0 %v165
    %259 = vmatpush.msra.mxu0 %v161
    %260 = vmatpush.msra.mxu0 %v157
    %261 = vmatpush.msra.mxu0 %v153
    %262 = vmatpush.msra.mxu0 %v149
    %263 = vmatpush.msra.mxu0 %v145
    %264 = vmatpush.msra.mxu0 %v141
    %265 = vmatpush.msra.mxu0 %v137
    %266 = vmatpush.msra.mxu0 %v133
    %267 = vmatpush.msra.mxu0 %v129
    %268 = vmatpush.msra.mxu0 %v125
    %269 = vmatpush.msra.mxu0 %v121
    %270 = vmatpush.msra.mxu0 %v117
    %271 = vmatmul.f32.gmra.mxu0 %v115
    %v272 = vpop.f32.mrf.mxu0
    %v273 = vadd.f32 %v247, %v272
    %274 = vdwg.mxu0
    %275 = vmatpush.msra.mxu0 %v241
    %276 = vmatpush.msra.mxu0 %v237
    %277 = vmatpush.msra.mxu0 %v233
    %278 = vmatpush.msra.mxu0 %v229
    %279 = vmatpush.msra.mxu0 %v225
    %280 = vmatpush.msra.mxu0 %v221
    %281 = vmatpush.msra.mxu0 %v217
    %282 = vmatpush.msra.mxu0 %v213
    %283 = vmatpush.msra.mxu0 %v209
    %284 = vmatpush.msra.mxu0 %v205
    %285 = vmatpush.msra.mxu0 %v201
    %286 = vmatpush.msra.mxu0 %v197
    %287 = vmatpush.msra.mxu0 %v193
    %288 = vmatpush.msra.mxu0 %v189
    %289 = vmatpush.msra.mxu0 %v185
    %290 = vmatpush.msra.mxu0 %v181
    %291 = vmatmul.f32.gmra.mxu0 %v116
    %v292 = vpop.f32.mrf.mxu0
    %v293 = vadd.f32 %v273, %v292
    %294 = vdwg.mxu0
    %295 = vmatpush.msra.mxu0 %v178
    %296 = vmatpush.msra.mxu0 %v174
    %297 = vmatpush.msra.mxu0 %v170
    %298 = vmatpush.msra.mxu0 %v166
    %299 = vmatpush.msra.mxu0 %v162
    %300 = vmatpush.msra.mxu0 %v158
    %301 = vmatpush.msra.mxu0 %v154
    %302 = vmatpush.msra.mxu0 %v150
    %303 = vmatpush.msra.mxu0 %v146
    %304 = vmatpush.msra.mxu0 %v142
    %305 = vmatpush.msra.mxu0 %v138
    %306 = vmatpush.msra.mxu0 %v134
    %307 = vmatpush.msra.mxu0 %v130
    %308 = vmatpush.msra.mxu0 %v126
    %309 = vmatpush.msra.mxu0 %v122
    %310 = vmatpush.msra.mxu0 %v118
    %311 = vmatmul.f32.gmra.mxu0 %v115
    %v312 = vpop.f32.mrf.mxu0
    %v313 = vadd.f32 %v248, %v312
    %314 = vdwg.mxu0
    %315 = vmatpush.msra.mxu0 %v242
    %316 = vmatpush.msra.mxu0 %v238
    %317 = vmatpush.msra.mxu0 %v234
    %318 = vmatpush.msra.mxu0 %v230
    %319 = vmatpush.msra.mxu0 %v226
    %320 = vmatpush.msra.mxu0 %v222
    %321 = vmatpush.msra.mxu0 %v218
    %322 = vmatpush.msra.mxu0 %v214
    %323 = vmatpush.msra.mxu0 %v210
    %324 = vmatpush.msra.mxu0 %v206
    %325 = vmatpush.msra.mxu0 %v202
    %326 = vmatpush.msra.mxu0 %v198
    %327 = vmatpush.msra.mxu0 %v194
    %328 = vmatpush.msra.mxu0 %v190
    %329 = vmatpush.msra.mxu0 %v186
    %330 = vmatpush.msra.mxu0 %v182
    %331 = vmatmul.f32.gmra.mxu0 %v116
    %v332 = vpop.f32.mrf.mxu0
    %v333 = vadd.f32 %v313, %v332
    %334 = vdwg.mxu0
    %335 = vmatpush.msra.mxu0 %v179
    %336 = vmatpush.msra.mxu0 %v175
    %337 = vmatpush.msra.mxu0 %v171
    %338 = vmatpush.msra.mxu0 %v167
    %339 = vmatpush.msra.mxu0 %v163
    %340 = vmatpush.msra.mxu0 %v159
    %341 = vmatpush.msra.mxu0 %v155
    %342 = vmatpush.msra.mxu0 %v151
    %343 = vmatpush.msra.mxu0 %v147
    %344 = vmatpush.msra.mxu0 %v143
    %345 = vmatpush.msra.mxu0 %v139
    %346 = vmatpush.msra.mxu0 %v135
    %347 = vmatpush.msra.mxu0 %v131
    %348 = vmatpush.msra.mxu0 %v127
    %349 = vmatpush.msra.mxu0 %v123
    %350 = vmatpush.msra.mxu0 %v119
    %351 = vmatmul.f32.gmra.mxu0 %v115
    %v352 = vpop.f32.mrf.mxu0
    %v353 = vadd.f32 %v249, %v352
    %354 = vdwg.mxu0
    %355 = vmatpush.msra.mxu0 %v243
    %356 = vmatpush.msra.mxu0 %v239
    %357 = vmatpush.msra.mxu0 %v235
    %358 = vmatpush.msra.mxu0 %v231
    %359 = vmatpush.msra.mxu0 %v227
    %360 = vmatpush.msra.mxu0 %v223
    %361 = vmatpush.msra.mxu0 %v219
    %362 = vmatpush.msra.mxu0 %v215
    %363 = vmatpush.msra.mxu0 %v211
    %364 = vmatpush.msra.mxu0 %v207
    %365 = vmatpush.msra.mxu0 %v203
    %366 = vmatpush.msra.mxu0 %v199
    %367 = vmatpush.msra.mxu0 %v195
    %368 = vmatpush.msra.mxu0 %v191
    %369 = vmatpush.msra.mxu0 %v187
    %370 = vmatpush.msra.mxu0 %v183
    %371 = vmatmul.f32.gmra.mxu0 %v116
    %v372 = vpop.f32.mrf.mxu0
    %v373 = vadd.f32 %v353, %v372
    %374 = vdwg.mxu0
    %375 = vmatpush.msra.mxu0 %v180
    %376 = vmatpush.msra.mxu0 %v176
    %377 = vmatpush.msra.mxu0 %v172
    %378 = vmatpush.msra.mxu0 %v168
    %379 = vmatpush.msra.mxu0 %v164
    %380 = vmatpush.msra.mxu0 %v160
    %381 = vmatpush.msra.mxu0 %v156
    %382 = vmatpush.msra.mxu0 %v152
    %383 = vmatpush.msra.mxu0 %v148
    %384 = vmatpush.msra.mxu0 %v144
    %385 = vmatpush.msra.mxu0 %v140
    %386 = vmatpush.msra.mxu0 %v136
    %387 = vmatpush.msra.mxu0 %v132
    %388 = vmatpush.msra.mxu0 %v128
    %389 = vmatpush.msra.mxu0 %v124
    %390 = vmatpush.msra.mxu0 %v120
    %391 = vmatmul.f32.gmra.mxu0 %v115
    %v392 = vpop.f32.mrf.mxu0
    %v393 = vadd.f32 %v250, %v392
    %394 = vdwg.mxu0
    %395 = vmatpush.msra.mxu0 %v244
    %396 = vmatpush.msra.mxu0 %v240
    %397 = vmatpush.msra.mxu0 %v236
    %398 = vmatpush.msra.mxu0 %v232
    %399 = vmatpush.msra.mxu0 %v228
    %400 = vmatpush.msra.mxu0 %v224
    %401 = vmatpush.msra.mxu0 %v220
    %402 = vmatpush.msra.mxu0 %v216
    %403 = vmatpush.msra.mxu0 %v212
    %404 = vmatpush.msra.mxu0 %v208
    %405 = vmatpush.msra.mxu0 %v204
    %406 = vmatpush.msra.mxu0 %v200
    %407 = vmatpush.msra.mxu0 %v196
    %408 = vmatpush.msra.mxu0 %v192
    %409 = vmatpush.msra.mxu0 %v188
    %410 = vmatpush.msra.mxu0 %v184
    %411 = vmatmul.f32.gmra.mxu0 %v116
    %v412 = vpop.f32.mrf.mxu0
    %v413 = vadd.f32 %v393, %v412
    %414 = vdwg.mxu0
    %v415 = vmax.f32 %v293, 0.0
    %v416 = vmax.f32 %v333, 0.0
    %v417 = vmax.f32 %v373, 0.0
    %v418 = vmax.f32 %v413, 0.0
    %v419 = vld [vmem:[#allocation8] sm:$0xff]
    %v420 = vld [vmem:[#allocation8 + $0x8] sm:$0xff]
    %v421 = vld [vmem:[#allocation8 + $0x10] sm:$0xff]
    %v422 = vld [vmem:[#allocation8 + $0x18] sm:$0xff]
    %v423 = vld [vmem:[#allocation8 + $0x20] sm:$0xff]
    %v424 = vld [vmem:[#allocation8 + $0x28] sm:$0xff]
    %v425 = vld [vmem:[#allocation8 + $0x30] sm:$0xff]
    %v426 = vld [vmem:[#allocation8 + $0x38] sm:$0xff]
    %v427 = vld [vmem:[#allocation8 + $0x40] sm:$0xff]
    %v428 = vld [vmem:[#allocation8 + $0x48] sm:$0xff]
    %v429 = vld [vmem:[#allocation8 + $0x50] sm:$0xff]
    %v430 = vld [vmem:[#allocation8 + $0x58] sm:$0xff]
    %v431 = vld [vmem:[#allocation8 + $0x60] sm:$0xff]
    %v432 = vld [vmem:[#allocation8 + $0x68] sm:$0xff]
    %v433 = vld [vmem:[#allocation8 + $0x70] sm:$0xff]
    %v434 = vld [vmem:[#allocation8 + $0x78] sm:$0xff]
    %v435 = vld [vmem:[#allocation8 + $0x80] sm:$0xff]
    %v436 = vld [vmem:[#allocation8 + $0x88] sm:$0xff]
    %v437 = vld [vmem:[#allocation8 + $0x90] sm:$0xff]
    %v438 = vld [vmem:[#allocation8 + $0x98] sm:$0xff]
    %v439 = vld [vmem:[#allocation8 + $0xa0] sm:$0xff]
    %v440 = vld [vmem:[#allocation8 + $0xa8] sm:$0xff]
    %v441 = vld [vmem:[#allocation8 + $0xb0] sm:$0xff]
    %v442 = vld [vmem:[#allocation8 + $0xb8] sm:$0xff]
    %v443 = vld [vmem:[#allocation8 + $0xc0] sm:$0xff]
    %v444 = vld [vmem:[#allocation8 + $0xc8] sm:$0xff]
    %v445 = vld [vmem:[#allocation8 + $0xd0] sm:$0xff]
    %v446 = vld [vmem:[#allocation8 + $0xd8] sm:$0xff]
    %v447 = vld [vmem:[#allocation8 + $0xe0] sm:$0xff]
    %v448 = vld [vmem:[#allocation8 + $0xe8] sm:$0xff]
    %v449 = vld [vmem:[#allocation8 + $0xf0] sm:$0xff]
    %v450 = vld [vmem:[#allocation8 + $0xf8] sm:$0xff]
    %v451 = vld [vmem:[#allocation8 + $0x100] sm:$0xff]
    %v452 = vld [vmem:[#allocation8 + $0x108] sm:$0xff]
    %v453 = vld [vmem:[#allocation8 + $0x110] sm:$0xff]
    %v454 = vld [vmem:[#allocation8 + $0x118] sm:$0xff]
    %v455 = vld [vmem:[#allocation8 + $0x120] sm:$0xff]
    %v456 = vld [vmem:[#allocation8 + $0x128] sm:$0xff]
    %v457 = vld [vmem:[#allocation8 + $0x130] sm:$0xff]
    %v458 = vld [vmem:[#allocation8 + $0x138] sm:$0xff]
    %v459 = vld [vmem:[#allocation8 + $0x140] sm:$0xff]
    %v460 = vld [vmem:[#allocation8 + $0x148] sm:$0xff]
    %v461 = vld [vmem:[#allocation8 + $0x150] sm:$0xff]
    %v462 = vld [vmem:[#allocation8 + $0x158] sm:$0xff]
    %v463 = vld [vmem:[#allocation8 + $0x160] sm:$0xff]
    %v464 = vld [vmem:[#allocation8 + $0x168] sm:$0xff]
    %v465 = vld [vmem:[#allocation8 + $0x170] sm:$0xff]
    %v466 = vld [vmem:[#allocation8 + $0x178] sm:$0xff]
    %v467 = vld [vmem:[#allocation8 + $0x180] sm:$0xff]
    %v468 = vld [vmem:[#allocation8 + $0x188] sm:$0xff]
    %v469 = vld [vmem:[#allocation8 + $0x190] sm:$0xff]
    %v470 = vld [vmem:[#allocation8 + $0x198] sm:$0xff]
    %v471 = vld [vmem:[#allocation8 + $0x1a0] sm:$0xff]
    %v472 = vld [vmem:[#allocation8 + $0x1a8] sm:$0xff]
    %v473 = vld [vmem:[#allocation8 + $0x1b0] sm:$0xff]
    %v474 = vld [vmem:[#allocation8 + $0x1b8] sm:$0xff]
    %v475 = vld [vmem:[#allocation8 + $0x1c0] sm:$0xff]
    %v476 = vld [vmem:[#allocation8 + $0x1c8] sm:$0xff]
    %v477 = vld [vmem:[#allocation8 + $0x1d0] sm:$0xff]
    %v478 = vld [vmem:[#allocation8 + $0x1d8] sm:$0xff]
    %v479 = vld [vmem:[#allocation8 + $0x1e0] sm:$0xff]
    %v480 = vld [vmem:[#allocation8 + $0x1e8] sm:$0xff]
    %v481 = vld [vmem:[#allocation8 + $0x1f0] sm:$0xff]
    %v482 = vld [vmem:[#allocation8 + $0x1f8] sm:$0xff]
    %v483 = vld [vmem:[#allocation8 + $0x200] sm:$0xff]
    %v484 = vld [vmem:[#allocation8 + $0x208] sm:$0xff]
    %v485 = vld [vmem:[#allocation8 + $0x210] sm:$0xff]
    %v486 = vld [vmem:[#allocation8 + $0x218] sm:$0xff]
    %v487 = vld [vmem:[#allocation8 + $0x220] sm:$0xff]
    %v488 = vld [vmem:[#allocation8 + $0x228] sm:$0xff]
    %v489 = vld [vmem:[#allocation8 + $0x230] sm:$0xff]
    %v490 = vld [vmem:[#allocation8 + $0x238] sm:$0xff]
    %v491 = vld [vmem:[#allocation8 + $0x240] sm:$0xff]
    %v492 = vld [vmem:[#allocation8 + $0x248] sm:$0xff]
    %v493 = vld [vmem:[#allocation8 + $0x250] sm:$0xff]
    %v494 = vld [vmem:[#allocation8 + $0x258] sm:$0xff]
    %v495 = vld [vmem:[#allocation8 + $0x260] sm:$0xff]
    %v496 = vld [vmem:[#allocation8 + $0x268] sm:$0xff]
    %v497 = vld [vmem:[#allocation8 + $0x270] sm:$0xff]
    %v498 = vld [vmem:[#allocation8 + $0x278] sm:$0xff]
    %v499 = vld [vmem:[#allocation8 + $0x280] sm:$0xff]
    %v500 = vld [vmem:[#allocation8 + $0x288] sm:$0xff]
    %v501 = vld [vmem:[#allocation8 + $0x290] sm:$0xff]
    %v502 = vld [vmem:[#allocation8 + $0x298] sm:$0xff]
    %v503 = vld [vmem:[#allocation8 + $0x2a0] sm:$0xff]
    %v504 = vld [vmem:[#allocation8 + $0x2a8] sm:$0xff]
    %v505 = vld [vmem:[#allocation8 + $0x2b0] sm:$0xff]
    %v506 = vld [vmem:[#allocation8 + $0x2b8] sm:$0xff]
    %v507 = vld [vmem:[#allocation8 + $0x2c0] sm:$0xff]
    %v508 = vld [vmem:[#allocation8 + $0x2c8] sm:$0xff]
    %v509 = vld [vmem:[#allocation8 + $0x2d0] sm:$0xff]
    %v510 = vld [vmem:[#allocation8 + $0x2d8] sm:$0xff]
    %v511 = vld [vmem:[#allocation8 + $0x2e0] sm:$0xff]
    %v512 = vld [vmem:[#allocation8 + $0x2e8] sm:$0xff]
    %v513 = vld [vmem:[#allocation8 + $0x2f0] sm:$0xff]
    %v514 = vld [vmem:[#allocation8 + $0x2f8] sm:$0xff]
    %v515 = vld [vmem:[#allocation8 + $0x300] sm:$0xff]
    %v516 = vld [vmem:[#allocation8 + $0x308] sm:$0xff]
    %v517 = vld [vmem:[#allocation8 + $0x310] sm:$0xff]
    %v518 = vld [vmem:[#allocation8 + $0x318] sm:$0xff]
    %v519 = vld [vmem:[#allocation8 + $0x320] sm:$0xff]
    %v520 = vld [vmem:[#allocation8 + $0x328] sm:$0xff]
    %v521 = vld [vmem:[#allocation8 + $0x330] sm:$0xff]
    %v522 = vld [vmem:[#allocation8 + $0x338] sm:$0xff]
    %v523 = vld [vmem:[#allocation8 + $0x340] sm:$0xff]
    %v524 = vld [vmem:[#allocation8 + $0x348] sm:$0xff]
    %v525 = vld [vmem:[#allocation8 + $0x350] sm:$0xff]
    %v526 = vld [vmem:[#allocation8 + $0x358] sm:$0xff]
    %v527 = vld [vmem:[#allocation8 + $0x360] sm:$0xff]
    %v528 = vld [vmem:[#allocation8 + $0x368] sm:$0xff]
    %v529 = vld [vmem:[#allocation8 + $0x370] sm:$0xff]
    %v530 = vld [vmem:[#allocation8 + $0x378] sm:$0xff]
    %v531 = vld [vmem:[#allocation8 + $0x380] sm:$0xff]
    %v532 = vld [vmem:[#allocation8 + $0x388] sm:$0xff]
    %v533 = vld [vmem:[#allocation8 + $0x390] sm:$0xff]
    %v534 = vld [vmem:[#allocation8 + $0x398] sm:$0xff]
    %v535 = vld [vmem:[#allocation8 + $0x3a0] sm:$0xff]
    %v536 = vld [vmem:[#allocation8 + $0x3a8] sm:$0xff]
    %v537 = vld [vmem:[#allocation8 + $0x3b0] sm:$0xff]
    %v538 = vld [vmem:[#allocation8 + $0x3b8] sm:$0xff]
    %v539 = vld [vmem:[#allocation8 + $0x3c0] sm:$0xff]
    %v540 = vld [vmem:[#allocation8 + $0x3c8] sm:$0xff]
    %v541 = vld [vmem:[#allocation8 + $0x3d0] sm:$0xff]
    %v542 = vld [vmem:[#allocation8 + $0x3d8] sm:$0xff]
    %v543 = vld [vmem:[#allocation8 + $0x3e0] sm:$0xff]
    %v544 = vld [vmem:[#allocation8 + $0x3e8] sm:$0xff]
    %v545 = vld [vmem:[#allocation8 + $0x3f0] sm:$0xff]
    %v546 = vld [vmem:[#allocation8 + $0x3f8] sm:$0xff]
    %v547 = vld [vmem:[#allocation8 + $0x400] sm:$0xff]
    %v548 = vld [vmem:[#allocation8 + $0x408] sm:$0xff]
    %v549 = vld [vmem:[#allocation8 + $0x410] sm:$0xff]
    %v550 = vld [vmem:[#allocation8 + $0x418] sm:$0xff]
    %v551 = vld [vmem:[#allocation8 + $0x420] sm:$0xff]
    %v552 = vld [vmem:[#allocation8 + $0x428] sm:$0xff]
    %v553 = vld [vmem:[#allocation8 + $0x430] sm:$0xff]
    %v554 = vld [vmem:[#allocation8 + $0x438] sm:$0xff]
    %v555 = vld [vmem:[#allocation8 + $0x440] sm:$0xff]
    %v556 = vld [vmem:[#allocation8 + $0x448] sm:$0xff]
    %v557 = vld [vmem:[#allocation8 + $0x450] sm:$0xff]
    %v558 = vld [vmem:[#allocation8 + $0x458] sm:$0xff]
    %v559 = vld [vmem:[#allocation8 + $0x460] sm:$0xff]
    %v560 = vld [vmem:[#allocation8 + $0x468] sm:$0xff]
    %v561 = vld [vmem:[#allocation8 + $0x470] sm:$0xff]
    %v562 = vld [vmem:[#allocation8 + $0x478] sm:$0xff]
    %v563 = vld [vmem:[#allocation8 + $0x480] sm:$0xff]
    %v564 = vld [vmem:[#allocation8 + $0x488] sm:$0xff]
    %v565 = vld [vmem:[#allocation8 + $0x490] sm:$0xff]
    %v566 = vld [vmem:[#allocation8 + $0x498] sm:$0xff]
    %v567 = vld [vmem:[#allocation8 + $0x4a0] sm:$0xff]
    %v568 = vld [vmem:[#allocation8 + $0x4a8] sm:$0xff]
    %v569 = vld [vmem:[#allocation8 + $0x4b0] sm:$0xff]
    %v570 = vld [vmem:[#allocation8 + $0x4b8] sm:$0xff]
    %v571 = vld [vmem:[#allocation8 + $0x4c0] sm:$0xff]
    %v572 = vld [vmem:[#allocation8 + $0x4c8] sm:$0xff]
    %v573 = vld [vmem:[#allocation8 + $0x4d0] sm:$0xff]
    %v574 = vld [vmem:[#allocation8 + $0x4d8] sm:$0xff]
    %v575 = vld [vmem:[#allocation8 + $0x4e0] sm:$0xff]
    %v576 = vld [vmem:[#allocation8 + $0x4e8] sm:$0xff]
    %v577 = vld [vmem:[#allocation8 + $0x4f0] sm:$0xff]
    %v578 = vld [vmem:[#allocation8 + $0x4f8] sm:$0xff]
    %v579 = vld [vmem:[#allocation8 + $0x500] sm:$0xff]
    %v580 = vld [vmem:[#allocation8 + $0x508] sm:$0xff]
    %v581 = vld [vmem:[#allocation8 + $0x510] sm:$0xff]
    %v582 = vld [vmem:[#allocation8 + $0x518] sm:$0xff]
    %v583 = vld [vmem:[#allocation8 + $0x520] sm:$0xff]
    %v584 = vld [vmem:[#allocation8 + $0x528] sm:$0xff]
    %v585 = vld [vmem:[#allocation8 + $0x530] sm:$0xff]
    %v586 = vld [vmem:[#allocation8 + $0x538] sm:$0xff]
    %v587 = vld [vmem:[#allocation8 + $0x540] sm:$0xff]
    %v588 = vld [vmem:[#allocation8 + $0x548] sm:$0xff]
    %v589 = vld [vmem:[#allocation8 + $0x550] sm:$0xff]
    %v590 = vld [vmem:[#allocation8 + $0x558] sm:$0xff]
    %v591 = vld [vmem:[#allocation8 + $0x560] sm:$0xff]
    %v592 = vld [vmem:[#allocation8 + $0x568] sm:$0xff]
    %v593 = vld [vmem:[#allocation8 + $0x570] sm:$0xff]
    %v594 = vld [vmem:[#allocation8 + $0x578] sm:$0xff]
    %v595 = vld [vmem:[#allocation8 + $0x580] sm:$0xff]
    %v596 = vld [vmem:[#allocation8 + $0x588] sm:$0xff]
    %v597 = vld [vmem:[#allocation8 + $0x590] sm:$0xff]
    %v598 = vld [vmem:[#allocation8 + $0x598] sm:$0xff]
    %v599 = vld [vmem:[#allocation8 + $0x5a0] sm:$0xff]
    %v600 = vld [vmem:[#allocation8 + $0x5a8] sm:$0xff]
    %v601 = vld [vmem:[#allocation8 + $0x5b0] sm:$0xff]
    %v602 = vld [vmem:[#allocation8 + $0x5b8] sm:$0xff]
    %v603 = vld [vmem:[#allocation8 + $0x5c0] sm:$0xff]
    %v604 = vld [vmem:[#allocation8 + $0x5c8] sm:$0xff]
    %v605 = vld [vmem:[#allocation8 + $0x5d0] sm:$0xff]
    %v606 = vld [vmem:[#allocation8 + $0x5d8] sm:$0xff]
    %v607 = vld [vmem:[#allocation8 + $0x5e0] sm:$0xff]
    %v608 = vld [vmem:[#allocation8 + $0x5e8] sm:$0xff]
    %v609 = vld [vmem:[#allocation8 + $0x5f0] sm:$0xff]
    %v610 = vld [vmem:[#allocation8 + $0x5f8] sm:$0xff]
    %v611 = vld [vmem:[#allocation8 + $0x600] sm:$0xff]
    %v612 = vld [vmem:[#allocation8 + $0x608] sm:$0xff]
    %v613 = vld [vmem:[#allocation8 + $0x610] sm:$0xff]
    %v614 = vld [vmem:[#allocation8 + $0x618] sm:$0xff]
    %v615 = vld [vmem:[#allocation8 + $0x620] sm:$0xff]
    %v616 = vld [vmem:[#allocation8 + $0x628] sm:$0xff]
    %v617 = vld [vmem:[#allocation8 + $0x630] sm:$0xff]
    %v618 = vld [vmem:[#allocation8 + $0x638] sm:$0xff]
    %v619 = vld [vmem:[#allocation8 + $0x640] sm:$0xff]
    %v620 = vld [vmem:[#allocation8 + $0x648] sm:$0xff]
    %v621 = vld [vmem:[#allocation8 + $0x650] sm:$0xff]
    %v622 = vld [vmem:[#allocation8 + $0x658] sm:$0xff]
    %v623 = vld [vmem:[#allocation8 + $0x660] sm:$0xff]
    %v624 = vld [vmem:[#allocation8 + $0x668] sm:$0xff]
    %v625 = vld [vmem:[#allocation8 + $0x670] sm:$0xff]
    %v626 = vld [vmem:[#allocation8 + $0x678] sm:$0xff]
    %v627 = vld [vmem:[#allocation8 + $0x680] sm:$0xff]
    %v628 = vld [vmem:[#allocation8 + $0x688] sm:$0xff]
    %v629 = vld [vmem:[#allocation8 + $0x690] sm:$0xff]
    %v630 = vld [vmem:[#allocation8 + $0x698] sm:$0xff]
    %v631 = vld [vmem:[#allocation8 + $0x6a0] sm:$0xff]
    %v632 = vld [vmem:[#allocation8 + $0x6a8] sm:$0xff]
    %v633 = vld [vmem:[#allocation8 + $0x6b0] sm:$0xff]
    %v634 = vld [vmem:[#allocation8 + $0x6b8] sm:$0xff]
    %v635 = vld [vmem:[#allocation8 + $0x6c0] sm:$0xff]
    %v636 = vld [vmem:[#allocation8 + $0x6c8] sm:$0xff]
    %v637 = vld [vmem:[#allocation8 + $0x6d0] sm:$0xff]
    %v638 = vld [vmem:[#allocation8 + $0x6d8] sm:$0xff]
    %v639 = vld [vmem:[#allocation8 + $0x6e0] sm:$0xff]
    %v640 = vld [vmem:[#allocation8 + $0x6e8] sm:$0xff]
    %v641 = vld [vmem:[#allocation8 + $0x6f0] sm:$0xff]
    %v642 = vld [vmem:[#allocation8 + $0x6f8] sm:$0xff]
    %v643 = vld [vmem:[#allocation8 + $0x700] sm:$0xff]
    %v644 = vld [vmem:[#allocation8 + $0x708] sm:$0xff]
    %v645 = vld [vmem:[#allocation8 + $0x710] sm:$0xff]
    %v646 = vld [vmem:[#allocation8 + $0x718] sm:$0xff]
    %v647 = vld [vmem:[#allocation8 + $0x720] sm:$0xff]
    %v648 = vld [vmem:[#allocation8 + $0x728] sm:$0xff]
    %v649 = vld [vmem:[#allocation8 + $0x730] sm:$0xff]
    %v650 = vld [vmem:[#allocation8 + $0x738] sm:$0xff]
    %v651 = vld [vmem:[#allocation8 + $0x740] sm:$0xff]
    %v652 = vld [vmem:[#allocation8 + $0x748] sm:$0xff]
    %v653 = vld [vmem:[#allocation8 + $0x750] sm:$0xff]
    %v654 = vld [vmem:[#allocation8 + $0x758] sm:$0xff]
    %v655 = vld [vmem:[#allocation8 + $0x760] sm:$0xff]
    %v656 = vld [vmem:[#allocation8 + $0x768] sm:$0xff]
    %v657 = vld [vmem:[#allocation8 + $0x770] sm:$0xff]
    %v658 = vld [vmem:[#allocation8 + $0x778] sm:$0xff]
    %v659 = vld [vmem:[#allocation8 + $0x780] sm:$0xff]
    %v660 = vld [vmem:[#allocation8 + $0x788] sm:$0xff]
    %v661 = vld [vmem:[#allocation8 + $0x790] sm:$0xff]
    %v662 = vld [vmem:[#allocation8 + $0x798] sm:$0xff]
    %v663 = vld [vmem:[#allocation8 + $0x7a0] sm:$0xff]
    %v664 = vld [vmem:[#allocation8 + $0x7a8] sm:$0xff]
    %v665 = vld [vmem:[#allocation8 + $0x7b0] sm:$0xff]
    %v666 = vld [vmem:[#allocation8 + $0x7b8] sm:$0xff]
    %v667 = vld [vmem:[#allocation8 + $0x7c0] sm:$0xff]
    %v668 = vld [vmem:[#allocation8 + $0x7c8] sm:$0xff]
    %v669 = vld [vmem:[#allocation8 + $0x7d0] sm:$0xff]
    %v670 = vld [vmem:[#allocation8 + $0x7d8] sm:$0xff]
    %v671 = vld [vmem:[#allocation8 + $0x7e0] sm:$0xff]
    %v672 = vld [vmem:[#allocation8 + $0x7e8] sm:$0xff]
    %v673 = vld [vmem:[#allocation8 + $0x7f0] sm:$0xff]
    %v674 = vld [vmem:[#allocation8 + $0x7f8] sm:$0xff]
    %v675 = vld [vmem:[#allocation10] sm:$0xf]
    %v677 = vperm.slane %v675, 0
    %v678 = vperm.slane %v675, 1
    %v679 = vperm.slane %v675, 2
    %v680 = vperm.slane %v675, 3
    %685 = vmatpush.msra.mxu0 %v479
    %686 = vmatpush.msra.mxu0 %v475
    %687 = vmatpush.msra.mxu0 %v471
    %688 = vmatpush.msra.mxu0 %v467
    %689 = vmatpush.msra.mxu0 %v463
    %690 = vmatpush.msra.mxu0 %v459
    %691 = vmatpush.msra.mxu0 %v455
    %692 = vmatpush.msra.mxu0 %v451
    %693 = vmatpush.msra.mxu0 %v447
    %694 = vmatpush.msra.mxu0 %v443
    %695 = vmatpush.msra.mxu0 %v439
    %696 = vmatpush.msra.mxu0 %v435
    %697 = vmatpush.msra.mxu0 %v431
    %698 = vmatpush.msra.mxu0 %v427
    %699 = vmatpush.msra.mxu0 %v423
    %700 = vmatpush.msra.mxu0 %v419
    %701 = vmatmul.f32.gmra.mxu0 %v415
    %v702 = vpop.f32.mrf.mxu0
    %v703 = vadd.f32 %v677, %v702
    %704 = vdwg.mxu0
    %705 = vmatpush.msra.mxu0 %v543
    %706 = vmatpush.msra.mxu0 %v539
    %707 = vmatpush.msra.mxu0 %v535
    %708 = vmatpush.msra.mxu0 %v531
    %709 = vmatpush.msra.mxu0 %v527
    %710 = vmatpush.msra.mxu0 %v523
    %711 = vmatpush.msra.mxu0 %v519
    %712 = vmatpush.msra.mxu0 %v515
    %713 = vmatpush.msra.mxu0 %v511
    %714 = vmatpush.msra.mxu0 %v507
    %715 = vmatpush.msra.mxu0 %v503
    %716 = vmatpush.msra.mxu0 %v499
    %717 = vmatpush.msra.mxu0 %v495
    %718 = vmatpush.msra.mxu0 %v491
    %719 = vmatpush.msra.mxu0 %v487
    %720 = vmatpush.msra.mxu0 %v483
    %721 = vmatmul.f32.gmra.mxu0 %v416
    %v722 = vpop.f32.mrf.mxu0
    %v723 = vadd.f32 %v703, %v722
    %724 = vdwg.mxu0
    %725 = vmatpush.msra.mxu0 %v607
    %726 = vmatpush.msra.mxu0 %v603
    %727 = vmatpush.msra.mxu0 %v599
    %728 = vmatpush.msra.mxu0 %v595
    %729 = vmatpush.msra.mxu0 %v591
    %730 = vmatpush.msra.mxu0 %v587
    %731 = vmatpush.msra.mxu0 %v583
    %732 = vmatpush.msra.mxu0 %v579
    %733 = vmatpush.msra.mxu0 %v575
    %734 = vmatpush.msra.mxu0 %v571
    %735 = vmatpush.msra.mxu0 %v567
    %736 = vmatpush.msra.mxu0 %v563
    %737 = vmatpush.msra.mxu0 %v559
    %738 = vmatpush.msra.mxu0 %v555
    %739 = vmatpush.msra.mxu0 %v551
    %740 = vmatpush.msra.mxu0 %v547
    %741 = vmatmul.f32.gmra.mxu0 %v417
    %v742 = vpop.f32.mrf.mxu0
    %v743 = vadd.f32 %v723, %v742
    %744 = vdwg.mxu0
    %745 = vmatpush.msra.mxu0 %v671
    %746 = vmatpush.msra.mxu0 %v667
    %747 = vmatpush.msra.mxu0 %v663
    %748 = vmatpush.msra.mxu0 %v659
    %749 = vmatpush.msra.mxu0 %v655
    %750 = vmatpush.msra.mxu0 %v651
    %751 = vmatpush.msra.mxu0 %v647
    %752 = vmatpush.msra.mxu0 %v643
    %753 = vmatpush.msra.mxu0 %v639
    %754 = vmatpush.msra.mxu0 %v635
    %755 = vmatpush.msra.mxu0 %v631
    %756 = vmatpush.msra.mxu0 %v627
    %757 = vmatpush.msra.mxu0 %v623
    %758 = vmatpush.msra.mxu0 %v619
    %759 = vmatpush.msra.mxu0 %v615
    %760 = vmatpush.msra.mxu0 %v611
    %761 = vmatmul.f32.gmra.mxu0 %v418
    %v762 = vpop.f32.mrf.mxu0
    %v763 = vadd.f32 %v743, %v762
    %764 = vdwg.mxu0
    %765 = vmatpush.msra.mxu0 %v480
    %766 = vmatpush.msra.mxu0 %v476
    %767 = vmatpush.msra.mxu0 %v472
    %768 = vmatpush.msra.mxu0 %v468
    %769 = vmatpush.msra.mxu0 %v464
    %770 = vmatpush.msra.mxu0 %v460
    %771 = vmatpush.msra.mxu0 %v456
    %772 = vmatpush.msra.mxu0 %v452
    %773 = vmatpush.msra.mxu0 %v448
    %774 = vmatpush.msra.mxu0 %v444
    %775 = vmatpush.msra.mxu0 %v440
    %776 = vmatpush.msra.mxu0 %v436
    %777 = vmatpush.msra.mxu0 %v432
    %778 = vmatpush.msra.mxu0 %v428
    %779 = vmatpush.msra.mxu0 %v424
    %780 = vmatpush.msra.mxu0 %v420
    %781 = vmatmul.f32.gmra.mxu0 %v415
    %v782 = vpop.f32.mrf.mxu0
    %v783 = vadd.f32 %v678, %v782
    %784 = vdwg.mxu0
    %785 = vmatpush.msra.mxu0 %v544
    %786 = vmatpush.msra.mxu0 %v540
    %787 = vmatpush.msra.mxu0 %v536
    %788 = vmatpush.msra.mxu0 %v532
    %789 = vmatpush.msra.mxu0 %v528
    %790 = vmatpush.msra.mxu0 %v524
    %791 = vmatpush.msra.mxu0 %v520
    %792 = vmatpush.msra.mxu0 %v516
    %793 = vmatpush.msra.mxu0 %v512
    %794 = vmatpush.msra.mxu0 %v508
    %795 = vmatpush.msra.mxu0 %v504
    %796 = vmatpush.msra.mxu0 %v500
    %797 = vmatpush.msra.mxu0 %v496
    %798 = vmatpush.msra.mxu0 %v492
    %799 = vmatpush.msra.mxu0 %v488
    %800 = vmatpush.msra.mxu0 %v484
    %801 = vmatmul.f32.gmra.mxu0 %v416
    %v802 = vpop.f32.mrf.mxu0
    %v803 = vadd.f32 %v783, %v802
    %804 = vdwg.mxu0
    %805 = vmatpush.msra.mxu0 %v608
    %806 = vmatpush.msra.mxu0 %v604
    %807 = vmatpush.msra.mxu0 %v600
    %808 = vmatpush.msra.mxu0 %v596
    %809 = vmatpush.msra.mxu0 %v592
    %810 = vmatpush.msra.mxu0 %v588
    %811 = vmatpush.msra.mxu0 %v584
    %812 = vmatpush.msra.mxu0 %v580
    %813 = vmatpush.msra.mxu0 %v576
    %814 = vmatpush.msra.mxu0 %v572
    %815 = vmatpush.msra.mxu0 %v568
    %816 = vmatpush.msra.mxu0 %v564
    %817 = vmatpush.msra.mxu0 %v560
    %818 = vmatpush.msra.mxu0 %v556
    %819 = vmatpush.msra.mxu0 %v552
    %820 = vmatpush.msra.mxu0 %v548
    %821 = vmatmul.f32.gmra.mxu0 %v417
    %v822 = vpop.f32.mrf.mxu0
    %v823 = vadd.f32 %v803, %v822
    %824 = vdwg.mxu0
    %825 = vmatpush.msra.mxu0 %v672
    %826 = vmatpush.msra.mxu0 %v668
    %827 = vmatpush.msra.mxu0 %v664
    %828 = vmatpush.msra.mxu0 %v660
    %829 = vmatpush.msra.mxu0 %v656
    %830 = vmatpush.msra.mxu0 %v652
    %831 = vmatpush.msra.mxu0 %v648
    %832 = vmatpush.msra.mxu0 %v644
    %833 = vmatpush.msra.mxu0 %v640
    %834 = vmatpush.msra.mxu0 %v636
    %835 = vmatpush.msra.mxu0 %v632
    %836 = vmatpush.msra.mxu0 %v628
    %837 = vmatpush.msra.mxu0 %v624
    %838 = vmatpush.msra.mxu0 %v620
    %839 = vmatpush.msra.mxu0 %v616
    %840 = vmatpush.msra.mxu0 %v612
    %841 = vmatmul.f32.gmra.mxu0 %v418
    %v842 = vpop.f32.mrf.mxu0
    %v843 = vadd.f32 %v823, %v842
    %844 = vdwg.mxu0
    %845 = vmatpush.msra.mxu0 %v481
    %846 = vmatpush.msra.mxu0 %v477
    %847 = vmatpush.msra.mxu0 %v473
    %848 = vmatpush.msra.mxu0 %v469
    %849 = vmatpush.msra.mxu0 %v465
    %850 = vmatpush.msra.mxu0 %v461
    %851 = vmatpush.msra.mxu0 %v457
    %852 = vmatpush.msra.mxu0 %v453
    %853 = vmatpush.msra.mxu0 %v449
    %854 = vmatpush.msra.mxu0 %v445
    %855 = vmatpush.msra.mxu0 %v441
    %856 = vmatpush.msra.mxu0 %v437
    %857 = vmatpush.msra.mxu0 %v433
    %858 = vmatpush.msra.mxu0 %v429
    %859 = vmatpush.msra.mxu0 %v425
    %860 = vmatpush.msra.mxu0 %v421
    %861 = vmatmul.f32.gmra.mxu0 %v415
    %v862 = vpop.f32.mrf.mxu0
    %v863 = vadd.f32 %v679, %v862
    %864 = vdwg.mxu0
    %865 = vmatpush.msra.mxu0 %v545
    %866 = vmatpush.msra.mxu0 %v541
    %867 = vmatpush.msra.mxu0 %v537
    %868 = vmatpush.msra.mxu0 %v533
    %869 = vmatpush.msra.mxu0 %v529
    %870 = vmatpush.msra.mxu0 %v525
    %871 = vmatpush.msra.mxu0 %v521
    %872 = vmatpush.msra.mxu0 %v517
    %873 = vmatpush.msra.mxu0 %v513
    %874 = vmatpush.msra.mxu0 %v509
    %875 = vmatpush.msra.mxu0 %v505
    %876 = vmatpush.msra.mxu0 %v501
    %877 = vmatpush.msra.mxu0 %v497
    %878 = vmatpush.msra.mxu0 %v493
    %879 = vmatpush.msra.mxu0 %v489
    %880 = vmatpush.msra.mxu0 %v485
    %881 = vmatmul.f32.gmra.mxu0 %v416
    %v882 = vpop.f32.mrf.mxu0
    %v883 = vadd.f32 %v863, %v882
    %884 = vdwg.mxu0
    %885 = vmatpush.msra.mxu0 %v609
    %886 = vmatpush.msra.mxu0 %v605
    %887 = vmatpush.msra.mxu0 %v601
    %888 = vmatpush.msra.mxu0 %v597
    %889 = vmatpush.msra.mxu0 %v593
    %890 = vmatpush.msra.mxu0 %v589
    %891 = vmatpush.msra.mxu0 %v585
    %892 = vmatpush.msra.mxu0 %v581
    %893 = vmatpush.msra.mxu0 %v577
    %894 = vmatpush.msra.mxu0 %v573
    %895 = vmatpush.msra.mxu0 %v569
    %896 = vmatpush.msra.mxu0 %v565
    %897 = vmatpush.msra.mxu0 %v561
    %898 = vmatpush.msra.mxu0 %v557
    %899 = vmatpush.msra.mxu0 %v553
    %900 = vmatpush.msra.mxu0 %v549
    %901 = vmatmul.f32.gmra.mxu0 %v417
    %v902 = vpop.f32.mrf.mxu0
    %v903 = vadd.f32 %v883, %v902
    %904 = vdwg.mxu0
    %905 = vmatpush.msra.mxu0 %v673
    %906 = vmatpush.msra.mxu0 %v669
    %907 = vmatpush.msra.mxu0 %v665
    %908 = vmatpush.msra.mxu0 %v661
    %909 = vmatpush.msra.mxu0 %v657
    %910 = vmatpush.msra.mxu0 %v653
    %911 = vmatpush.msra.mxu0 %v649
    %912 = vmatpush.msra.mxu0 %v645
    %913 = vmatpush.msra.mxu0 %v641
    %914 = vmatpush.msra.mxu0 %v637
    %915 = vmatpush.msra.mxu0 %v633
    %916 = vmatpush.msra.mxu0 %v629
    %917 = vmatpush.msra.mxu0 %v625
    %918 = vmatpush.msra.mxu0 %v621
    %919 = vmatpush.msra.mxu0 %v617
    %920 = vmatpush.msra.mxu0 %v613
    %921 = vmatmul.f32.gmra.mxu0 %v418
    %v922 = vpop.f32.mrf.mxu0
    %v923 = vadd.f32 %v903, %v922
    %924 = vdwg.mxu0
    %925 = vmatpush.msra.mxu0 %v482
    %926 = vmatpush.msra.mxu0 %v478
    %927 = vmatpush.msra.mxu0 %v474
    %928 = vmatpush.msra.mxu0 %v470
    %929 = vmatpush.msra.mxu0 %v466
    %930 = vmatpush.msra.mxu0 %v462
    %931 = vmatpush.msra.mxu0 %v458
    %932 = vmatpush.msra.mxu0 %v454
    %933 = vmatpush.msra.mxu0 %v450
    %934 = vmatpush.msra.mxu0 %v446
    %935 = vmatpush.msra.mxu0 %v442
    %936 = vmatpush.msra.mxu0 %v438
    %937 = vmatpush.msra.mxu0 %v434
    %938 = vmatpush.msra.mxu0 %v430
    %939 = vmatpush.msra.mxu0 %v426
    %940 = vmatpush.msra.mxu0 %v422
    %941 = vmatmul.f32.gmra.mxu0 %v415
    %v942 = vpop.f32.mrf.mxu0
    %v943 = vadd.f32 %v680, %v942
    %944 = vdwg.mxu0
    %945 = vmatpush.msra.mxu0 %v546
    %946 = vmatpush.msra.mxu0 %v542
    %947 = vmatpush.msra.mxu0 %v538
    %948 = vmatpush.msra.mxu0 %v534
    %949 = vmatpush.msra.mxu0 %v530
    %950 = vmatpush.msra.mxu0 %v526
    %951 = vmatpush.msra.mxu0 %v522
    %952 = vmatpush.msra.mxu0 %v518
    %953 = vmatpush.msra.mxu0 %v514
    %954 = vmatpush.msra.mxu0 %v510
    %955 = vmatpush.msra.mxu0 %v506
    %956 = vmatpush.msra.mxu0 %v502
    %957 = vmatpush.msra.mxu0 %v498
    %958 = vmatpush.msra.mxu0 %v494
    %959 = vmatpush.msra.mxu0 %v490
    %960 = vmatpush.msra.mxu0 %v486
    %961 = vmatmul.f32.gmra.mxu0 %v416
    %v962 = vpop.f32.mrf.mxu0
    %v963 = vadd.f32 %v943, %v962
    %964 = vdwg.mxu0
    %965 = vmatpush.msra.mxu0 %v610
    %966 = vmatpush.msra.mxu0 %v606
    %967 = vmatpush.msra.mxu0 %v602
    %968 = vmatpush.msra.mxu0 %v598
    %969 = vmatpush.msra.mxu0 %v594
    %970 = vmatpush.msra.mxu0 %v590
    %971 = vmatpush.msra.mxu0 %v586
    %972 = vmatpush.msra.mxu0 %v582
    %973 = vmatpush.msra.mxu0 %v578
    %974 = vmatpush.msra.mxu0 %v574
    %975 = vmatpush.msra.mxu0 %v570
    %976 = vmatpush.msra.mxu0 %v566
    %977 = vmatpush.msra.mxu0 %v562
    %978 = vmatpush.msra.mxu0 %v558
    %979 = vmatpush.msra.mxu0 %v554
    %980 = vmatpush.msra.mxu0 %v550
    %981 = vmatmul.f32.gmra.mxu0 %v417
    %v982 = vpop.f32.mrf.mxu0
    %v983 = vadd.f32 %v963, %v982
    %984 = vdwg.mxu0
    %985 = vmatpush.msra.mxu0 %v674
    %986 = vmatpush.msra.mxu0 %v670
    %987 = vmatpush.msra.mxu0 %v666
    %988 = vmatpush.msra.mxu0 %v662
    %989 = vmatpush.msra.mxu0 %v658
    %990 = vmatpush.msra.mxu0 %v654
    %991 = vmatpush.msra.mxu0 %v650
    %992 = vmatpush.msra.mxu0 %v646
    %993 = vmatpush.msra.mxu0 %v642
    %994 = vmatpush.msra.mxu0 %v638
    %995 = vmatpush.msra.mxu0 %v634
    %996 = vmatpush.msra.mxu0 %v630
    %997 = vmatpush.msra.mxu0 %v626
    %998 = vmatpush.msra.mxu0 %v622
    %999 = vmatpush.msra.mxu0 %v618
    %1000 = vmatpush.msra.mxu0 %v614
    %1001 = vmatmul.f32.gmra.mxu0 %v418
    %v1002 = vpop.f32.mrf.mxu0
    %v1003 = vadd.f32 %v983, %v1002
    %1004 = vdwg.mxu0
    %v1005 = vmax.f32 %v763, 0.0
    %v1006 = vmax.f32 %v843, 0.0
    %v1007 = vmax.f32 %v923, 0.0
    %v1008 = vmax.f32 %v1003, 0.0
    %v1009 = vld [vmem:[#allocation11] sm:$0xff]
    %v1010 = vld [vmem:[#allocation11 + $0x8] sm:$0xff]
    %v1011 = vld [vmem:[#allocation11 + $0x10] sm:$0xff]
    %v1012 = vld [vmem:[#allocation11 + $0x18] sm:$0xff]
    %v1013 = vld [vmem:[#allocation11 + $0x20] sm:$0xff]
    %v1014 = vld [vmem:[#allocation11 + $0x28] sm:$0xff]
    %v1015 = vld [vmem:[#allocation11 + $0x30] sm:$0xff]
    %v1016 = vld [vmem:[#allocation11 + $0x38] sm:$0xff]
    %v1017 = vld [vmem:[#allocation11 + $0x40] sm:$0xff]
    %v1018 = vld [vmem:[#allocation11 + $0x48] sm:$0xff]
    %v1019 = vld [vmem:[#allocation11 + $0x50] sm:$0xff]
    %v1020 = vld [vmem:[#allocation11 + $0x58] sm:$0xff]
    %v1021 = vld [vmem:[#allocation11 + $0x60] sm:$0xff]
    %v1022 = vld [vmem:[#allocation11 + $0x68] sm:$0xff]
    %v1023 = vld [vmem:[#allocation11 + $0x70] sm:$0xff]
    %v1024 = vld [vmem:[#allocation11 + $0x78] sm:$0xff]
    %v1025 = vld [vmem:[#allocation11 + $0x80] sm:$0xff]
    %v1026 = vld [vmem:[#allocation11 + $0x88] sm:$0xff]
    %v1027 = vld [vmem:[#allocation11 + $0x90] sm:$0xff]
    %v1028 = vld [vmem:[#allocation11 + $0x98] sm:$0xff]
    %v1029 = vld [vmem:[#allocation11 + $0xa0] sm:$0xff]
    %v1030 = vld [vmem:[#allocation11 + $0xa8] sm:$0xff]
    %v1031 = vld [vmem:[#allocation11 + $0xb0] sm:$0xff]
    %v1032 = vld [vmem:[#allocation11 + $0xb8] sm:$0xff]
    %v1033 = vld [vmem:[#allocation11 + $0xc0] sm:$0xff]
    %v1034 = vld [vmem:[#allocation11 + $0xc8] sm:$0xff]
    %v1035 = vld [vmem:[#allocation11 + $0xd0] sm:$0xff]
    %v1036 = vld [vmem:[#allocation11 + $0xd8] sm:$0xff]
    %v1037 = vld [vmem:[#allocation11 + $0xe0] sm:$0xff]
    %v1038 = vld [vmem:[#allocation11 + $0xe8] sm:$0xff]
    %v1039 = vld [vmem:[#allocation11 + $0xf0] sm:$0xff]
    %v1040 = vld [vmem:[#allocation11 + $0xf8] sm:$0xff]
    %v1041 = vld [vmem:[#allocation11 + $0x100] sm:$0xff]
    %v1042 = vld [vmem:[#allocation11 + $0x108] sm:$0xff]
    %v1043 = vld [vmem:[#allocation11 + $0x110] sm:$0xff]
    %v1044 = vld [vmem:[#allocation11 + $0x118] sm:$0xff]
    %v1045 = vld [vmem:[#allocation11 + $0x120] sm:$0xff]
    %v1046 = vld [vmem:[#allocation11 + $0x128] sm:$0xff]
    %v1047 = vld [vmem:[#allocation11 + $0x130] sm:$0xff]
    %v1048 = vld [vmem:[#allocation11 + $0x138] sm:$0xff]
    %v1049 = vld [vmem:[#allocation11 + $0x140] sm:$0xff]
    %v1050 = vld [vmem:[#allocation11 + $0x148] sm:$0xff]
    %v1051 = vld [vmem:[#allocation11 + $0x150] sm:$0xff]
    %v1052 = vld [vmem:[#allocation11 + $0x158] sm:$0xff]
    %v1053 = vld [vmem:[#allocation11 + $0x160] sm:$0xff]
    %v1054 = vld [vmem:[#allocation11 + $0x168] sm:$0xff]
    %v1055 = vld [vmem:[#allocation11 + $0x170] sm:$0xff]
    %v1056 = vld [vmem:[#allocation11 + $0x178] sm:$0xff]
    %v1057 = vld [vmem:[#allocation11 + $0x180] sm:$0xff]
    %v1058 = vld [vmem:[#allocation11 + $0x188] sm:$0xff]
    %v1059 = vld [vmem:[#allocation11 + $0x190] sm:$0xff]
    %v1060 = vld [vmem:[#allocation11 + $0x198] sm:$0xff]
    %v1061 = vld [vmem:[#allocation11 + $0x1a0] sm:$0xff]
    %v1062 = vld [vmem:[#allocation11 + $0x1a8] sm:$0xff]
    %v1063 = vld [vmem:[#allocation11 + $0x1b0] sm:$0xff]
    %v1064 = vld [vmem:[#allocation11 + $0x1b8] sm:$0xff]
    %v1065 = vld [vmem:[#allocation11 + $0x1c0] sm:$0xff]
    %v1066 = vld [vmem:[#allocation11 + $0x1c8] sm:$0xff]
    %v1067 = vld [vmem:[#allocation11 + $0x1d0] sm:$0xff]
    %v1068 = vld [vmem:[#allocation11 + $0x1d8] sm:$0xff]
    %v1069 = vld [vmem:[#allocation11 + $0x1e0] sm:$0xff]
    %v1070 = vld [vmem:[#allocation11 + $0x1e8] sm:$0xff]
    %v1071 = vld [vmem:[#allocation11 + $0x1f0] sm:$0xff]
    %v1072 = vld [vmem:[#allocation11 + $0x1f8] sm:$0xff]
    %v1073 = vld [vmem:[%s6] sm:$0x1]
    %v1075 = vperm.slane %v1073, 0
    %1077 = vmatpush.msra.mxu0 %v1024
    %1078 = vmatpush.msra.mxu0 %v1023
    %1079 = vmatpush.msra.mxu0 %v1022
    %1080 = vmatpush.msra.mxu0 %v1021
    %1081 = vmatpush.msra.mxu0 %v1020
    %1082 = vmatpush.msra.mxu0 %v1019
    %1083 = vmatpush.msra.mxu0 %v1018
    %1084 = vmatpush.msra.mxu0 %v1017
    %1085 = vmatpush.msra.mxu0 %v1016
    %1086 = vmatpush.msra.mxu0 %v1015
    %1087 = vmatpush.msra.mxu0 %v1014
    %1088 = vmatpush.msra.mxu0 %v1013
    %1089 = vmatpush.msra.mxu0 %v1012
    %1090 = vmatpush.msra.mxu0 %v1011
    %1091 = vmatpush.msra.mxu0 %v1010
    %1092 = vmatpush.msra.mxu0 %v1009
    %1093 = vmatmul.f32.gmra.mxu0 %v1005
    %v1094 = vpop.f32.mrf.mxu0
    %v1095 = vadd.f32 %v1075, %v1094
    %1096 = vdwg.mxu0
    %1097 = vmatpush.msra.mxu0 %v1040
    %1098 = vmatpush.msra.mxu0 %v1039
    %1099 = vmatpush.msra.mxu0 %v1038
    %1100 = vmatpush.msra.mxu0 %v1037
    %1101 = vmatpush.msra.mxu0 %v1036
    %1102 = vmatpush.msra.mxu0 %v1035
    %1103 = vmatpush.msra.mxu0 %v1034
    %1104 = vmatpush.msra.mxu0 %v1033
    %1105 = vmatpush.msra.mxu0 %v1032
    %1106 = vmatpush.msra.mxu0 %v1031
    %1107 = vmatpush.msra.mxu0 %v1030
    %1108 = vmatpush.msra.mxu0 %v1029
    %1109 = vmatpush.msra.mxu0 %v1028
    %1110 = vmatpush.msra.mxu0 %v1027
    %1111 = vmatpush.msra.mxu0 %v1026
    %1112 = vmatpush.msra.mxu0 %v1025
    %1113 = vmatmul.f32.gmra.mxu0 %v1006
    %v1114 = vpop.f32.mrf.mxu0
    %v1115 = vadd.f32 %v1095, %v1114
    %1116 = vdwg.mxu0
    %1117 = vmatpush.msra.mxu0 %v1056
    %1118 = vmatpush.msra.mxu0 %v1055
    %1119 = vmatpush.msra.mxu0 %v1054
    %1120 = vmatpush.msra.mxu0 %v1053
    %1121 = vmatpush.msra.mxu0 %v1052
    %1122 = vmatpush.msra.mxu0 %v1051
    %1123 = vmatpush.msra.mxu0 %v1050
    %1124 = vmatpush.msra.mxu0 %v1049
    %1125 = vmatpush.msra.mxu0 %v1048
    %1126 = vmatpush.msra.mxu0 %v1047
    %1127 = vmatpush.msra.mxu0 %v1046
    %1128 = vmatpush.msra.mxu0 %v1045
    %1129 = vmatpush.msra.mxu0 %v1044
    %1130 = vmatpush.msra.mxu0 %v1043
    %1131 = vmatpush.msra.mxu0 %v1042
    %1132 = vmatpush.msra.mxu0 %v1041
    %1133 = vmatmul.f32.gmra.mxu0 %v1007
    %v1134 = vpop.f32.mrf.mxu0
    %v1135 = vadd.f32 %v1115, %v1134
    %1136 = vdwg.mxu0
    %1137 = vmatpush.msra.mxu0 %v1072
    %1138 = vmatpush.msra.mxu0 %v1071
    %1139 = vmatpush.msra.mxu0 %v1070
    %1140 = vmatpush.msra.mxu0 %v1069
    %1141 = vmatpush.msra.mxu0 %v1068
    %1142 = vmatpush.msra.mxu0 %v1067
    %1143 = vmatpush.msra.mxu0 %v1066
    %1144 = vmatpush.msra.mxu0 %v1065
    %1145 = vmatpush.msra.mxu0 %v1064
    %1146 = vmatpush.msra.mxu0 %v1063
    %1147 = vmatpush.msra.mxu0 %v1062
    %1148 = vmatpush.msra.mxu0 %v1061
    %1149 = vmatpush.msra.mxu0 %v1060
    %1150 = vmatpush.msra.mxu0 %v1059
    %1151 = vmatpush.msra.mxu0 %v1058
    %1152 = vmatpush.msra.mxu0 %v1057
    %1153 = vmatmul.f32.gmra.mxu0 %v1008
    %v1154 = vpop.f32.mrf.mxu0
    %v1155 = vadd.f32 %v1135, %v1154
    %1156 = vdwg.mxu0
    %1157 = vst [vmem:[#allocation13] sm:$0xff] %v1155
    // Predicated region
    $region54: #{tpu_custom_call.1} parent=1 // pred_check
      _
    $region55: #{tpu_custom_call.1} parent=1 // pred_check_branch
      %1159 = sbr.rel (0) target = $region57
    $region56: #{tpu_custom_call.1} parent=1 // pred_region
      %1161 = vsyncadd [#allocation4], 0
      %s1163 = sshll.u32 [#allocation13], 4
      %s1164 = int_to_ptr.vmem [resolvable:$true] %s1163
      %s1165 = sshll.u32 %s7, 4
      %s1166 = int_to_ptr.hbm [resolvable:$true] %s1165
      %1168 = dma.vmem_to_hbm [thread:$0]  %s1164, 128, %s1166, [#allocation4]
    $region57: #{tpu_custom_call.1} parent=1 // pred_fallthru
      _
    // Predicated region
    $region58: #{tpu_custom_call.1} parent=1 // pred_check
      _
    $region59: #{tpu_custom_call.1} parent=1 // pred_check_branch
      %1170 = sbr.rel (0) target = $region61
    $region60: #{tpu_custom_call.1} parent=1 // pred_region
      %1172 = dma.done [#allocation4], 128
    $region61: #{tpu_custom_call.1} parent=1 // pred_fallthru
      _
    %1173 = vsyncpa [#allocation3], 1
    %1174 = vsyncpa [#allocation6], 1
    %1175 = vsyncpa [#allocation9], 1
    %1176 = vsyncpa [#allocation12], 1
    %1177 = vsyncpa [#allocation4], 1

</llo_original>
